<compile_context>
chip_gen: v7x
topology: tpu7x:2x2x1
jax: 0.10.0
libtpu: 0.0.40
codegen_flags: <defaults>
</compile_context>

<pallas_src>
import jax
import jax.numpy as jnp
from jax.experimental import pallas as pl
from jax.experimental.pallas import tpu as pltpu


def mlp_kernel(xt_ref, w1_ref, b1_ref, w2_ref, b2_ref, o_ref):
    # ---- Layer 1: hidden = relu(W1 @ xT + b1) ------------------------------
    # K = n_feature is tiny, so do it as VPU broadcast-FMAs (no MXU pass):
    #   h[j, n] = b1[j] + sum_k W1[j, k] * xT[k, n]
    # b1 (n_hidden, 1) seeds the accumulation chain, i.e. the bias add is
    # folded into the first FMA instead of being a separate pass.
    n_feature = xt_ref.shape[0]
    h = b1_ref[...] + w1_ref[:, 0:1] * xt_ref[0:1, :]
    for k in range(1, n_feature):                      # static, tiny unroll
        h = h + w1_ref[:, k:k + 1] * xt_ref[k:k + 1, :]
    h = jnp.maximum(h, 0.0)

    # ---- Layer 2: out = W2 @ h + b2 ----------------------------------------
    # One MXU pass; the (n_output, N_pad) result is lane-dense (batch on lanes).
    o = jnp.dot(w2_ref[...], h, preferred_element_type=jnp.float32)
    o_ref[...] = o + b2_ref[...]


def net_forward(x, w1, b1, w2, b2):
    """Fused two-layer MLP forward pass (equivalent to Net.forward).

    x  : (N, n_feature)          float32
    w1 : (n_hidden, n_feature)   torch nn.Linear layout
    b1 : (n_hidden,)
    w2 : (n_output, n_hidden)
    b2 : (n_output,)
    returns (N, n_output) float32
    """
    n, n_feature = x.shape
    n_hidden = w1.shape[0]
    n_output = w2.shape[0]

    # Lane-dense batch axis: pad N up to a multiple of 128 and put it on lanes.
    n_pad = ((n + 127) // 128) * 128
    xt = jnp.zeros((n_feature, n_pad), jnp.float32).at[:, :n].set(x.T)

    b1c = b1.reshape(n_hidden, 1).astype(jnp.float32)   # column biases broadcast over lanes
    b2c = b2.reshape(n_output, 1).astype(jnp.float32)

    flops = 2 * n_pad * (n_feature * n_hidden + n_hidden * n_output)
    bytes_accessed = 4 * (xt.size + w1.size + b1c.size + w2.size + b2c.size
                          + n_output * n_pad)

    vmem = pl.BlockSpec(memory_space=pltpu.MemorySpace.VMEM)
    out_t = pl.pallas_call(
        mlp_kernel,
        out_shape=jax.ShapeDtypeStruct((n_output, n_pad), jnp.float32),
        in_specs=[vmem, vmem, vmem, vmem, vmem],
        out_specs=vmem,
        cost_estimate=pl.CostEstimate(
            flops=flops, transcendentals=0, bytes_accessed=bytes_accessed),
    )(xt, w1.astype(jnp.float32), b1c, w2.astype(jnp.float32), b2c)

    # Layout plumbing back to the PyTorch convention: (N, n_output).
    return out_t[:, :n].T


def init_params(key, n_feature, n_hidden, n_output):
    """Deterministic init mimicking torch.nn.Linear's uniform(-1/sqrt(in), 1/sqrt(in))."""
    k1, k2, k3, k4 = jax.random.split(key, 4)
    bound1 = 1.0 / jnp.sqrt(n_feature)
    bound2 = 1.0 / jnp.sqrt(n_hidden)
    # torch layout: W (out_features, in_features), b (out_features,)
    w1 = jax.random.uniform(k1, (n_hidden, n_feature), jnp.float32, -bound1, bound1)
    b1 = jax.random.uniform(k2, (n_hidden,), jnp.float32, -bound1, bound1)
    w2 = jax.random.uniform(k3, (n_output, n_hidden), jnp.float32, -bound2, bound2)
    b2 = jax.random.uniform(k4, (n_output,), jnp.float32, -bound2, bound2)
    return w1, b1, w2, b2


if __name__ == "__main__":
    n_feature, n_hidden, n_output = 2, 10, 2
    batch = 200  # matches torch.cat((x0, x1), 0) of two (100, 2) blobs

    key = jax.random.PRNGKey(0)
    kx, kp = jax.random.split(key)

    # Synthetic two-cluster input, analogous to the torch.normal(+/-2, 1) data.
    n_half = batch // 2
    base = jax.random.normal(kx, (batch, n_feature), jnp.float32)
    centers = jnp.concatenate(
        [jnp.full((n_half, n_feature), 2.0),
         jnp.full((batch - n_half, n_feature), -2.0)], axis=0)
    x = base + centers

    w1, b1, w2, b2 = init_params(kp, n_feature, n_hidden, n_output)

    out = net_forward(x, w1, b1, w2, b2)
    jax.block_until_ready(out)

    # Pure-JAX reference check of the fused kernel (torch-layout weights).
    ref = jnp.maximum(x @ w1.T + b1, 0.0) @ w2.T + b2
    assert out.shape == (batch, n_output)
    assert jnp.allclose(out, ref, atol=1e-5, rtol=1e-5)

    print("KERNEL_OK")
</pallas_src>

<mosaic_0001>
module attributes {stable_mosaic.version = 11 : i64} {
  func.func @mlp_kernel(%arg0: memref<2x256xf32, #tpu.memory_space<vmem>>, %arg1: memref<10x2xf32, #tpu.memory_space<vmem>>, %arg2: memref<10x1xf32, #tpu.memory_space<vmem>>, %arg3: memref<2x10xf32, #tpu.memory_space<vmem>>, %arg4: memref<2x1xf32, #tpu.memory_space<vmem>>, %arg5: memref<2x256xf32, #tpu.memory_space<vmem>>) attributes {dimension_semantics = [], scalar_prefetch = 0 : i64, scratch_operands = 0 : i64, tpu.core_type = #tpu.core_type<tc>} {
    %c0 = arith.constant 0 : index
    %c0_0 = arith.constant 0 : index
    %0 = vector.load %arg2[%c0, %c0_0] : memref<10x1xf32, #tpu.memory_space<vmem>>, vector<10x1xf32>
    %c0_1 = arith.constant 0 : index
    %c0_2 = arith.constant 0 : index
    %1 = vector.load %arg1[%c0_1, %c0_2] : memref<10x2xf32, #tpu.memory_space<vmem>>, vector<10x1xf32>
    %c0_3 = arith.constant 0 : index
    %c0_4 = arith.constant 0 : index
    %2 = vector.load %arg0[%c0_3, %c0_4] : memref<2x256xf32, #tpu.memory_space<vmem>>, vector<1x256xf32>
    %3 = vector.broadcast %1 : vector<10x1xf32> to vector<10x256xf32>
    %4 = vector.broadcast %2 : vector<1x256xf32> to vector<10x256xf32>
    %5 = arith.mulf %3, %4 : vector<10x256xf32>
    %6 = vector.broadcast %0 : vector<10x1xf32> to vector<10x256xf32>
    %7 = arith.addf %6, %5 : vector<10x256xf32>
    %c0_5 = arith.constant 0 : index
    %c1 = arith.constant 1 : index
    %8 = vector.load %arg1[%c0_5, %c1] : memref<10x2xf32, #tpu.memory_space<vmem>>, vector<10x1xf32>
    %c1_6 = arith.constant 1 : index
    %c0_7 = arith.constant 0 : index
    %9 = vector.load %arg0[%c1_6, %c0_7] : memref<2x256xf32, #tpu.memory_space<vmem>>, vector<1x256xf32>
    %10 = vector.broadcast %8 : vector<10x1xf32> to vector<10x256xf32>
    %11 = vector.broadcast %9 : vector<1x256xf32> to vector<10x256xf32>
    %12 = arith.mulf %10, %11 : vector<10x256xf32>
    %13 = arith.addf %7, %12 : vector<10x256xf32>
    %cst = arith.constant 0.000000e+00 : f32
    %14 = vector.broadcast %cst : f32 to vector<10x256xf32>
    %15 = arith.maximumf %13, %14 : vector<10x256xf32>
    %c0_8 = arith.constant 0 : index
    %c0_9 = arith.constant 0 : index
    %16 = vector.load %arg3[%c0_8, %c0_9] : memref<2x10xf32, #tpu.memory_space<vmem>>, vector<2x10xf32>
    %cst_10 = arith.constant dense<0.000000e+00> : vector<2x256xf32>
    %17 = tpu.matmul %16, %15, %cst_10 {dimension_numbers = #tpu.dot_dimension_numbers<[1], [0], [0], [1], [0, 0, 1, 1], [], []>} : vector<2x10xf32>, vector<10x256xf32>, vector<2x256xf32> -> vector<2x256xf32>
    %c0_11 = arith.constant 0 : index
    %c0_12 = arith.constant 0 : index
    %18 = vector.load %arg4[%c0_11, %c0_12] : memref<2x1xf32, #tpu.memory_space<vmem>>, vector<2x1xf32>
    %19 = vector.broadcast %18 : vector<2x1xf32> to vector<2x256xf32>
    %20 = arith.addf %17, %19 : vector<2x256xf32>
    %c0_13 = arith.constant 0 : index
    %c0_14 = arith.constant 0 : index
    %21 = vector.load %arg5[%c0_13, %c0_14] : memref<2x256xf32, #tpu.memory_space<vmem>>, vector<2x256xf32>
    tpu.vector_store %arg5[%c0_13, %c0_14], %20 {strides = array<i32>} : memref<2x256xf32, #tpu.memory_space<vmem>>, vector<2x256xf32>,
    return
  }
}

</mosaic_0001>

<llo_original>
// kernel: tpu_custom_call.1
$region0: #{tpu_custom_call.1}
  #allocation0 [shape = 'u32[]', space=smem, size = 0x4, offset = 0x4, fixed_abs, tag = 'smem constant byte address 0x4 - core index']
  #allocation1 [shape = 'u32[144,128]{1,0:T(1,128)}', space=vmem, size = 0x12000, scoped, tag = 'internal scratch']
  %s0 = inlined_call_operand.vmem [shape: f32[2,256], index: 0, kind: input, shape index: {}]
  %s1 = inlined_call_operand.vmem [shape: f32[10,2], index: 1, kind: input, shape index: {}]
  %s2 = inlined_call_operand.vmem [shape: f32[10,1], index: 2, kind: input, shape index: {}]
  %s3 = inlined_call_operand.vmem [shape: f32[2,10], index: 3, kind: input, shape index: {}]
  %s4 = inlined_call_operand.vmem [shape: f32[2,1], index: 4, kind: input, shape index: {}]
  %s5 = inlined_call_operand.hbm [shape: f32[2,256], index: 5, kind: output, shape index: {}]
  %s6 = sld [smem:[#allocation0]]
  $region30: #{tpu_custom_call.1} parent=0
    _
  %s8 = ssub.s32 1, %s6
  %s9 = scalar_select 0, %s8, %s6
  $region1: #{tpu_custom_call.1} parent=0
    #allocation2 [shape = 'u8[2048]{0}', space=vmem, size = 0x800, scoped, tag = 'output window, operand 0, single buffered']
    #allocation3 [shape = 's32[1]{0}', space=sflag, size = 0x4, scoped, tag = 'scoped memory for tpu_custom_call.1']
    %10 = vsyncpa [#allocation3], 0
    // Predicated region
    $region2: #{tpu_custom_call.1} parent=1 // pred_check
      _
    $region3: #{tpu_custom_call.1} parent=1 // pred_check_branch
      %12 = sbr.rel (0) target = $region5
    $region4: #{tpu_custom_call.1} parent=1 // pred_region
      _
    $region5: #{tpu_custom_call.1} parent=1 // pred_fallthru
      _
    // Predicated region
    $region6: #{tpu_custom_call.1} parent=1 // pred_check
      _
    $region7: #{tpu_custom_call.1} parent=1 // pred_check_branch
      %14 = sbr.rel (0) target = $region9
    $region8: #{tpu_custom_call.1} parent=1 // pred_region
      _
    $region9: #{tpu_custom_call.1} parent=1 // pred_fallthru
      _
    // Predicated region
    $region10: #{tpu_custom_call.1} parent=1 // pred_check
      _
    $region11: #{tpu_custom_call.1} parent=1 // pred_check_branch
      %16 = sbr.rel (0) target = $region13
    $region12: #{tpu_custom_call.1} parent=1 // pred_region
      _
    $region13: #{tpu_custom_call.1} parent=1 // pred_fallthru
      _
    // Predicated region
    $region14: #{tpu_custom_call.1} parent=1 // pred_check
      _
    $region15: #{tpu_custom_call.1} parent=1 // pred_check_branch
      %18 = sbr.rel (0) target = $region17
    $region16: #{tpu_custom_call.1} parent=1 // pred_region
      _
    $region17: #{tpu_custom_call.1} parent=1 // pred_fallthru
      _
    // Predicated region
    $region18: #{tpu_custom_call.1} parent=1 // pred_check
      _
    $region19: #{tpu_custom_call.1} parent=1 // pred_check_branch
      %20 = sbr.rel (0) target = $region21
    $region20: #{tpu_custom_call.1} parent=1 // pred_region
      _
    $region21: #{tpu_custom_call.1} parent=1 // pred_fallthru
      _
    %v21 = vld [vmem:[%s2] sm:$0xff]
    %v22 = vld [vmem:[%s2 + $0x8] sm:$0x3]
    %v23 = vld [vmem:[%s1] sm:$0xff]
    %v24 = vld [vmem:[%s1 + $0x8] sm:$0x3]
    %v25 = vld [vmem:[%s0] ss:$2 sm:$0x3]
    %27 = vset.pattern.permute.xlu0 0
    %28 = vperm.xlu0 %27, %v23
    %v29 = vpop.permute.xlu0 %28
    %32 = vset.pattern.permute.xlu0 0
    %33 = vperm.xlu0 %32, %v24
    %v34 = vpop.permute.xlu0 %33
    %v37 = vlaneseq
    %v38 = vshrl.u32 %v37, 7
    %v39 = vsub.s32 0, %v38
    %v40 = vrot.slane %v25, %v39
    %v41 = vlaneseq
    %v42 = vshrl.u32 %v41, 7
    %v43 = vsub.s32 1, %v42
    %v44 = vrot.slane %v25, %v43
    %v47 = vmul.f32 %v29, %v40
    %v48 = vmul.f32 %v29, %v44
    %v49 = vmul.f32 %v34, %v40
    %v50 = vmul.f32 %v34, %v44
    %52 = vset.pattern.permute.xlu0 0
    %53 = vperm.xlu0 %52, %v21
    %v54 = vpop.permute.xlu0 %53
    %57 = vset.pattern.permute.xlu0 0
    %58 = vperm.xlu0 %57, %v22
    %v59 = vpop.permute.xlu0 %58
    %v61 = vadd.f32 %v54, %v47
    %v62 = vadd.f32 %v54, %v48
    %v63 = vadd.f32 %v59, %v49
    %v64 = vadd.f32 %v59, %v50
    %s65 = scalar_lea.vmem %s0, 1
    %v66 = vld [vmem:[%s65] ss:$2 sm:$0x3]
    %67 = vset.pattern.permute.xlu0 1
    %68 = vperm.xlu0 %67, %v23
    %v69 = vpop.permute.xlu0 %68
    %71 = vset.pattern.permute.xlu0 1
    %72 = vperm.xlu0 %71, %v24
    %v73 = vpop.permute.xlu0 %72
    %v76 = vlaneseq
    %v77 = vshrl.u32 %v76, 7
    %v78 = vsub.s32 0, %v77
    %v79 = vrot.slane %v66, %v78
    %v80 = vlaneseq
    %v81 = vshrl.u32 %v80, 7
    %v82 = vsub.s32 1, %v81
    %v83 = vrot.slane %v66, %v82
    %v86 = vmul.f32 %v69, %v79
    %v87 = vmul.f32 %v69, %v83
    %v88 = vmul.f32 %v73, %v79
    %v89 = vmul.f32 %v73, %v83
    %v90 = vadd.f32 %v61, %v86
    %v91 = vadd.f32 %v62, %v87
    %v92 = vadd.f32 %v63, %v88
    %v93 = vadd.f32 %v64, %v89
    %v94 = vmax.f32 %v90, 0.0
    %v95 = vmax.f32 %v91, 0.0
    %v96 = vmax.f32 %v92, 0.0
    %v97 = vmax.f32 %v93, 0.0
    %v98 = vld [vmem:[%s3] sm:$0x3]
    %v99 = vld [vmem:[%s4] sm:$0x3]
    %101 = vset.pattern.permute.xlu0 0
    %102 = vperm.xlu0 %101, %v99
    %v103 = vpop.permute.xlu0 %102
    %vm105 = vcmask 80896
    %v107 = vsel %vm105, %v98, 0
    %vm109 = vcmask 1041408
    %v111 = vsel %vm109, %v96, 0
    %v114 = vsel %vm109, %v97, 0
    %116 = vmatprep.subr.mxu0 %v95
    %117 = vmatpush1.msra.mxu0 %v94
    %118 = vmatprep.subr.mxu0 %v114
    %119 = vmatpush1.msra.mxu0 %v111
    %120 = vmatprep.subr.mxu0 0.0
    %121 = vmatpush1.msra.mxu0 0.0
    %122 = vmatprep.subr.mxu0 0.0
    %123 = vmatpush1.msra.mxu0 0.0
    %124 = vmatprep.subr.mxu0 0.0
    %125 = vmatpush1.msra.mxu0 0.0
    %126 = vmatprep.subr.mxu0 0.0
    %127 = vmatpush1.msra.mxu0 0.0
    %128 = vmatprep.subr.mxu0 0.0
    %129 = vmatpush1.msra.mxu0 0.0
    %130 = vmatprep.subr.mxu0 0.0
    %131 = vmatpush1.msra.mxu0 0.0
    %132 = vmatprep.subr.mxu0 0.0
    %133 = vmatpush1.msra.mxu0 0.0
    %134 = vmatprep.subr.mxu0 0.0
    %135 = vmatpush1.msra.mxu0 0.0
    %136 = vmatprep.subr.mxu0 0.0
    %137 = vmatpush1.msra.mxu0 0.0
    %138 = vmatprep.subr.mxu0 0.0
    %139 = vmatpush1.msra.mxu0 0.0
    %140 = vmatprep.subr.mxu0 0.0
    %141 = vmatpush1.msra.mxu0 0.0
    %142 = vmatprep.subr.mxu0 0.0
    %143 = vmatpush1.msra.mxu0 0.0
    %144 = vmatprep.subr.mxu0 0.0
    %145 = vmatpush1.msra.mxu0 0.0
    %146 = vmatprep.subr.mxu0 0.0
    %147 = vmatpush1.msra.mxu0 0.0
    %148 = vmatprep.subr.mxu0 0.0
    %149 = vmatpush1.msra.mxu0 0.0
    %150 = vmatprep.subr.mxu0 0.0
    %151 = vmatpush1.msra.mxu0 0.0
    %152 = vmatprep.subr.mxu0 0.0
    %153 = vmatpush1.msra.mxu0 0.0
    %154 = vmatprep.subr.mxu0 0.0
    %155 = vmatpush1.msra.mxu0 0.0
    %156 = vmatprep.subr.mxu0 0.0
    %157 = vmatpush1.msra.mxu0 0.0
    %158 = vmatprep.subr.mxu0 0.0
    %159 = vmatpush1.msra.mxu0 0.0
    %160 = vmatprep.subr.mxu0 0.0
    %161 = vmatpush1.msra.mxu0 0.0
    %162 = vmatprep.subr.mxu0 0.0
    %163 = vmatpush1.msra.mxu0 0.0
    %164 = vmatprep.subr.mxu0 0.0
    %165 = vmatpush1.msra.mxu0 0.0
    %166 = vmatprep.subr.mxu0 0.0
    %167 = vmatpush1.msra.mxu0 0.0
    %168 = vmatprep.subr.mxu0 0.0
    %169 = vmatpush1.msra.mxu0 0.0
    %170 = vmatprep.subr.mxu0 0.0
    %171 = vmatpush1.msra.mxu0 0.0
    %172 = vmatprep.subr.mxu0 0.0
    %173 = vmatpush1.msra.mxu0 0.0
    %174 = vmatprep.subr.mxu0 0.0
    %175 = vmatpush1.msra.mxu0 0.0
    %176 = vmatprep.subr.mxu0 0.0
    %177 = vmatpush1.msra.mxu0 0.0
    %178 = vmatprep.subr.mxu0 0.0
    %179 = vmatpush1.msra.mxu0 0.0
    %180 = vmatprep.mubr.f32.mxu0 0.0
    %181 = vmatmul.mubr.f32.gmra.mrb[0].mxu0 %v107
    %v182 = vpop.f32.mrb[0].mxu0
    %v183 = vadd.f32 %v103, %v182
    %v184 = vpop.f32.mrb[0].mxu0
    %v185 = vadd.f32 %v103, %v184
    %186 = vdwg.mxu0
    %v189 = vcombine.low %v183, %v185
    %v191 = vunpack.c.l.s4 1983009808
    %v192 = vunpack.c.0.s8 %v191
    %v193 = vlaneseq
    %v194 = vshrl.u32 %v193, 7
    %v195 = vsub.s32 %v192, %v194
    %v196 = vrot.slane %v189, %v195
    %198 = vst [vmem:[#allocation2] sm:$0xf] %v196
    // Predicated region
    $region22: #{tpu_custom_call.1} parent=1 // pred_check
      _
    $region23: #{tpu_custom_call.1} parent=1 // pred_check_branch
      %200 = sbr.rel (0) target = $region25
    $region24: #{tpu_custom_call.1} parent=1 // pred_region
      %s202 = ssub.s32 64, 64
      %203 = vsyncadd [#allocation3], %s202
      %s205 = sshll.u32 [#allocation2], 4
      %s206 = int_to_ptr.vmem [resolvable:$true] %s205
      %208 = dma.vmem_to_hbm [thread:$0]  %s206, 64, %s5, [#allocation3]
    $region25: #{tpu_custom_call.1} parent=1 // pred_fallthru
      _
    // Predicated region
    $region26: #{tpu_custom_call.1} parent=1 // pred_check
      _
    $region27: #{tpu_custom_call.1} parent=1 // pred_check_branch
      %210 = sbr.rel (0) target = $region29
    $region28: #{tpu_custom_call.1} parent=1 // pred_region
      %211 = dma.done [#allocation3], 64
    $region29: #{tpu_custom_call.1} parent=1 // pred_fallthru
      _
    %212 = vsyncpa [#allocation3], 1

</llo_original>
